<compile_context>
chip_gen: v7x
topology: tpu7x:2x2x1
jax: 0.10.0
libtpu: 0.0.40
codegen_flags: <defaults>
</compile_context>

<pallas_src>
import jax
import jax.numpy as jnp
import numpy as np
from jax.experimental import pallas as pl
from jax.experimental.pallas import tpu as pltpu


def super_pixels_kernel(x_ref, wb_ref, o_ref):
    """x_ref: (TN, C, T) VMEM; wb_ref: (C+1,) SMEM = [w_0..w_{C-1}, bias]; o_ref: (TN, T)."""
    n_ch = x_ref.shape[1]
    # Unrolled per-channel accumulation: each term is a scalar-from-SMEM broadcast
    # multiply of a (TN, T) slab read straight from the input block. Avoids the
    # block-sized (TN, C, T) product temp and the XLU sublane-reduction tree.
    acc = x_ref[:, 0, :].astype(jnp.float32) * wb_ref[0]
    for c in range(1, n_ch):
        acc = acc + x_ref[:, c, :].astype(jnp.float32) * wb_ref[c]
    o_ref[...] = acc + wb_ref[n_ch]


def _vmem_plan():
    """Per-generation VMEM budget: (vmem_limit_bytes, target x-block bytes)."""
    try:
        cap = int(pltpu.get_tpu_info().vmem_capacity_bytes)
    except Exception:
        cap = 64 << 20  # v7x per-TC capacity: safe lower bound on every generation
    if cap <= 0:
        cap = 64 << 20
    # 128 MiB parts (v5e/v6e) -> 64 MiB limit; 64 MiB parts (v7x) -> 32 MiB limit.
    vmem_limit = max(32 << 20, min(cap // 2, 64 << 20))
    # One x block (double-buffered by the pipeline) -> ~quarter of the limit,
    # capped at 16 MiB (v6e sweet spot); 8 MiB on v7x.
    target_block = max(1 << 20, min(vmem_limit // 4, 16 << 20))
    return vmem_limit, target_block


def _divisor_tiles(extent, quantum):
    """Ascending multiples of `quantum` that evenly divide `extent`; [extent] if none."""
    if extent % quantum != 0:
        return [extent]
    return [t for t in range(quantum, extent + 1, quantum) if extent % t == 0]


def _plan_tiles(n, c, hw, elem_bytes, target_block_bytes):
    """Pick (tile_n, tile_hw) for x blocks of shape (tile_n, C, tile_hw)."""
    hw_tiles = _divisor_tiles(hw, 128)

    # Phase 1: full batch in the block, largest lane-dense tile under the budget.
    tile_n, tile_hw = n, hw_tiles[0]
    for t in hw_tiles:
        if n * c * t * elem_bytes <= target_block_bytes:
            tile_hw = t
    fits = n * c * tile_hw * elem_bytes <= target_block_bytes

    # Phase 2: N*C too large even at the smallest lane tile -> tile the batch axis
    # in sublane multiples (output-block rule: tile_n % 8 == 0 or tile_n == N).
    if not fits and n % 8 == 0 and n > 8:
        n_tiles = _divisor_tiles(n, 8)
        tile_n = n_tiles[0]
        for t in n_tiles:
            if t * c * tile_hw * elem_bytes <= target_block_bytes:
                tile_n = t
    # Note: if HW is not a multiple of 128 AND N*C*HW is huge, the block stays
    # full-extent and may exceed the VMEM budget; acceptable for this module's
    # small shapes, revisit if used with production-sized non-aligned spatial dims.

    # Phase 3: never collapse to a single grid step when HW allows >=2 tiles
    # (keeps both v7x TensorCores and their HBM-bandwidth share busy).
    if (n // tile_n) * (hw // tile_hw) == 1 and len(hw_tiles) > 1:
        tile_hw = max(t for t in hw_tiles if t < hw)

    return tile_n, tile_hw


def super_pixels_forward(x, conv_w, conv_b, factor=2):
    """x: (N, C, H, W) f32/bf16. conv_w: (1, C // (factor*2), 2, 2). conv_b: (1,)."""
    assert factor == 2, "module channel arithmetic only consistent for factor=2"
    N, C, H, W = x.shape
    planes = C // (factor * 2)
    assert planes * factor * factor == C
    assert conv_w.shape == (1, planes, factor, factor)
    HW = H * W

    # Fold PixelShuffle + 2x2/s2 conv weights into a (C,) vector; append the bias.
    # w_vec[c*4 + i*2 + j] = conv_w[0, c, i, j]  (plain row-major reshape).
    w_vec = conv_w.reshape(C).astype(jnp.float32)
    wb = jnp.concatenate([w_vec, conv_b.reshape(1).astype(jnp.float32)])  # (C+1,) -> SMEM

    x_flat = x.reshape(N, C, HW)  # free reshape, no transpose; keep caller dtype
    elem_bytes = x_flat.dtype.itemsize

    vmem_limit, target_block = _vmem_plan()
    tile_n, tile_hw = _plan_tiles(N, C, HW, elem_bytes, target_block)
    grid = (N // tile_n, HW // tile_hw)
    steps = grid[0] * grid[1]

    # Optional third input buffer when there are many (small) steps and it fits.
    x_block_bytes = tile_n * C * tile_hw * elem_bytes
    out_block_bytes = tile_n * tile_hw * 4
    x_spec_kwargs = {}
    if steps >= 4 and 3 * x_block_bytes + 2 * out_block_bytes <= vmem_limit:
        x_spec_kwargs["pipeline_mode"] = pl.Buffered(3)

    cost = pl.CostEstimate(
        flops=2 * N * C * HW,
        transcendentals=0,
        bytes_accessed=elem_bytes * N * C * HW + 4 * (N * HW + C + 1),
    )

    out = pl.pallas_call(
        super_pixels_kernel,
        out_shape=jax.ShapeDtypeStruct((N, HW), jnp.float32),
        grid=grid,
        in_specs=[
            pl.BlockSpec((tile_n, C, tile_hw), lambda i, j: (i, 0, j), **x_spec_kwargs),
            pl.BlockSpec(memory_space=pltpu.MemorySpace.SMEM),  # folded weights + bias
        ],
        out_specs=pl.BlockSpec((tile_n, tile_hw), lambda i, j: (i, j)),
        compiler_params=pltpu.CompilerParams(
            dimension_semantics=("parallel", "parallel"),
            vmem_limit_bytes=vmem_limit,
        ),
        cost_estimate=cost,
    )(x_flat, wb)

    return out.reshape(N, 1, H, W)


def reference_forward(x, conv_w, conv_b, factor=2):
    """Pure-JAX reference: explicit PixelShuffle + conv2d, mirrors PyTorch semantics."""
    N, C, H, W = x.shape
    r = factor
    Co = C // (r * r)
    # PyTorch PixelShuffle: out[n, c, h*r+i, w*r+j] = in[n, c*r*r + i*r + j, h, w]
    s = (
        x.reshape(N, Co, r, r, H, W)
        .transpose(0, 1, 4, 2, 5, 3)
        .reshape(N, Co, H * r, W * r)
    )
    y = jax.lax.conv_general_dilated(
        s, conv_w, window_strides=(2, 2), padding="VALID",
        dimension_numbers=("NCHW", "OIHW", "NCHW"),
    )
    return y + conv_b.reshape(1, 1, 1, 1)


if __name__ == "__main__":
    # Module config: super_pixels(inplanes=16, factor=2) -> planes = 16 / 4 = 4
    inplanes, factor = 16, 2
    planes = inplanes // (factor * 2)
    N, H, W = 2, 16, 16

    key = jax.random.PRNGKey(0)
    kx, kw, kb = jax.random.split(key, 3)
    x = jax.random.normal(kx, (N, inplanes, H, W), dtype=jnp.float32)
    # Deterministic synthetic Conv2d(planes, 1, kernel_size=2, stride=2) params.
    conv_w = jax.random.normal(kw, (1, planes, factor, factor), dtype=jnp.float32) * 0.1
    conv_b = jax.random.normal(kb, (1,), dtype=jnp.float32) * 0.1

    out = jax.block_until_ready(super_pixels_forward(x, conv_w, conv_b, factor=factor))
    ref = reference_forward(x, conv_w, conv_b, factor=factor)

    assert out.shape == (N, 1, H, W)
    np.testing.assert_allclose(np.asarray(out), np.asarray(ref), rtol=1e-5, atol=1e-5)

    print("KERNEL_OK")
</pallas_src>

<mosaic_0001>
module attributes {stable_mosaic.version = 11 : i64} {
  func.func @super_pixels_kernel(%arg0: i32, %arg1: i32, %arg2: memref<2x16x128xf32, #tpu.memory_space<vmem>>, %arg3: memref<17xf32, #tpu.memory_space<smem>>, %arg4: memref<2x128xf32, #tpu.memory_space<vmem>>) attributes {dimension_semantics = [#tpu.dimension_semantics<parallel>, #tpu.dimension_semantics<parallel>], iteration_bounds = array<i64: 1, 2>, scalar_prefetch = 0 : i64, scratch_operands = 0 : i64, tpu.core_type = #tpu.core_type<tc>, window_params = [{transform_indices = @transform_0, window_bounds = array<i64: 2, 16, 128>}, {transform_indices = @transform_1, window_bounds = array<i64: 17>}, {transform_indices = @transform_2, window_bounds = array<i64: 2, 128>}]} {
    %c0 = arith.constant 0 : index
    %c0_0 = arith.constant 0 : index
    %c0_1 = arith.constant 0 : index
    %0 = vector.load %arg2[%c0, %c0_0, %c0_1] : memref<2x16x128xf32, #tpu.memory_space<vmem>>, vector<2x1x128xf32>
    %1 = vector.shape_cast %0 : vector<2x1x128xf32> to vector<2x128xf32>
    %c0_2 = arith.constant 0 : index
    %2 = memref.load %arg3[%c0_2] : memref<17xf32, #tpu.memory_space<smem>>
    %3 = vector.broadcast %2 : f32 to vector<2x128xf32>
    %4 = arith.mulf %1, %3 : vector<2x128xf32>
    %c0_3 = arith.constant 0 : index
    %c1 = arith.constant 1 : index
    %c0_4 = arith.constant 0 : index
    %5 = vector.load %arg2[%c0_3, %c1, %c0_4] : memref<2x16x128xf32, #tpu.memory_space<vmem>>, vector<2x1x128xf32>
    %6 = vector.shape_cast %5 : vector<2x1x128xf32> to vector<2x128xf32>
    %c1_5 = arith.constant 1 : index
    %7 = memref.load %arg3[%c1_5] : memref<17xf32, #tpu.memory_space<smem>>
    %8 = vector.broadcast %7 : f32 to vector<2x128xf32>
    %9 = arith.mulf %6, %8 : vector<2x128xf32>
    %10 = arith.addf %4, %9 : vector<2x128xf32>
    %c0_6 = arith.constant 0 : index
    %c2 = arith.constant 2 : index
    %c0_7 = arith.constant 0 : index
    %11 = vector.load %arg2[%c0_6, %c2, %c0_7] : memref<2x16x128xf32, #tpu.memory_space<vmem>>, vector<2x1x128xf32>
    %12 = vector.shape_cast %11 : vector<2x1x128xf32> to vector<2x128xf32>
    %c2_8 = arith.constant 2 : index
    %13 = memref.load %arg3[%c2_8] : memref<17xf32, #tpu.memory_space<smem>>
    %14 = vector.broadcast %13 : f32 to vector<2x128xf32>
    %15 = arith.mulf %12, %14 : vector<2x128xf32>
    %16 = arith.addf %10, %15 : vector<2x128xf32>
    %c0_9 = arith.constant 0 : index
    %c3 = arith.constant 3 : index
    %c0_10 = arith.constant 0 : index
    %17 = vector.load %arg2[%c0_9, %c3, %c0_10] : memref<2x16x128xf32, #tpu.memory_space<vmem>>, vector<2x1x128xf32>
    %18 = vector.shape_cast %17 : vector<2x1x128xf32> to vector<2x128xf32>
    %c3_11 = arith.constant 3 : index
    %19 = memref.load %arg3[%c3_11] : memref<17xf32, #tpu.memory_space<smem>>
    %20 = vector.broadcast %19 : f32 to vector<2x128xf32>
    %21 = arith.mulf %18, %20 : vector<2x128xf32>
    %22 = arith.addf %16, %21 : vector<2x128xf32>
    %c0_12 = arith.constant 0 : index
    %c4 = arith.constant 4 : index
    %c0_13 = arith.constant 0 : index
    %23 = vector.load %arg2[%c0_12, %c4, %c0_13] : memref<2x16x128xf32, #tpu.memory_space<vmem>>, vector<2x1x128xf32>
    %24 = vector.shape_cast %23 : vector<2x1x128xf32> to vector<2x128xf32>
    %c4_14 = arith.constant 4 : index
    %25 = memref.load %arg3[%c4_14] : memref<17xf32, #tpu.memory_space<smem>>
    %26 = vector.broadcast %25 : f32 to vector<2x128xf32>
    %27 = arith.mulf %24, %26 : vector<2x128xf32>
    %28 = arith.addf %22, %27 : vector<2x128xf32>
    %c0_15 = arith.constant 0 : index
    %c5 = arith.constant 5 : index
    %c0_16 = arith.constant 0 : index
    %29 = vector.load %arg2[%c0_15, %c5, %c0_16] : memref<2x16x128xf32, #tpu.memory_space<vmem>>, vector<2x1x128xf32>
    %30 = vector.shape_cast %29 : vector<2x1x128xf32> to vector<2x128xf32>
    %c5_17 = arith.constant 5 : index
    %31 = memref.load %arg3[%c5_17] : memref<17xf32, #tpu.memory_space<smem>>
    %32 = vector.broadcast %31 : f32 to vector<2x128xf32>
    %33 = arith.mulf %30, %32 : vector<2x128xf32>
    %34 = arith.addf %28, %33 : vector<2x128xf32>
    %c0_18 = arith.constant 0 : index
    %c6 = arith.constant 6 : index
    %c0_19 = arith.constant 0 : index
    %35 = vector.load %arg2[%c0_18, %c6, %c0_19] : memref<2x16x128xf32, #tpu.memory_space<vmem>>, vector<2x1x128xf32>
    %36 = vector.shape_cast %35 : vector<2x1x128xf32> to vector<2x128xf32>
    %c6_20 = arith.constant 6 : index
    %37 = memref.load %arg3[%c6_20] : memref<17xf32, #tpu.memory_space<smem>>
    %38 = vector.broadcast %37 : f32 to vector<2x128xf32>
    %39 = arith.mulf %36, %38 : vector<2x128xf32>
    %40 = arith.addf %34, %39 : vector<2x128xf32>
    %c0_21 = arith.constant 0 : index
    %c7 = arith.constant 7 : index
    %c0_22 = arith.constant 0 : index
    %41 = vector.load %arg2[%c0_21, %c7, %c0_22] : memref<2x16x128xf32, #tpu.memory_space<vmem>>, vector<2x1x128xf32>
    %42 = vector.shape_cast %41 : vector<2x1x128xf32> to vector<2x128xf32>
    %c7_23 = arith.constant 7 : index
    %43 = memref.load %arg3[%c7_23] : memref<17xf32, #tpu.memory_space<smem>>
    %44 = vector.broadcast %43 : f32 to vector<2x128xf32>
    %45 = arith.mulf %42, %44 : vector<2x128xf32>
    %46 = arith.addf %40, %45 : vector<2x128xf32>
    %c0_24 = arith.constant 0 : index
    %c8 = arith.constant 8 : index
    %c0_25 = arith.constant 0 : index
    %47 = vector.load %arg2[%c0_24, %c8, %c0_25] : memref<2x16x128xf32, #tpu.memory_space<vmem>>, vector<2x1x128xf32>
    %48 = vector.shape_cast %47 : vector<2x1x128xf32> to vector<2x128xf32>
    %c8_26 = arith.constant 8 : index
    %49 = memref.load %arg3[%c8_26] : memref<17xf32, #tpu.memory_space<smem>>
    %50 = vector.broadcast %49 : f32 to vector<2x128xf32>
    %51 = arith.mulf %48, %50 : vector<2x128xf32>
    %52 = arith.addf %46, %51 : vector<2x128xf32>
    %c0_27 = arith.constant 0 : index
    %c9 = arith.constant 9 : index
    %c0_28 = arith.constant 0 : index
    %53 = vector.load %arg2[%c0_27, %c9, %c0_28] : memref<2x16x128xf32, #tpu.memory_space<vmem>>, vector<2x1x128xf32>
    %54 = vector.shape_cast %53 : vector<2x1x128xf32> to vector<2x128xf32>
    %c9_29 = arith.constant 9 : index
    %55 = memref.load %arg3[%c9_29] : memref<17xf32, #tpu.memory_space<smem>>
    %56 = vector.broadcast %55 : f32 to vector<2x128xf32>
    %57 = arith.mulf %54, %56 : vector<2x128xf32>
    %58 = arith.addf %52, %57 : vector<2x128xf32>
    %c0_30 = arith.constant 0 : index
    %c10 = arith.constant 10 : index
    %c0_31 = arith.constant 0 : index
    %59 = vector.load %arg2[%c0_30, %c10, %c0_31] : memref<2x16x128xf32, #tpu.memory_space<vmem>>, vector<2x1x128xf32>
    %60 = vector.shape_cast %59 : vector<2x1x128xf32> to vector<2x128xf32>
    %c10_32 = arith.constant 10 : index
    %61 = memref.load %arg3[%c10_32] : memref<17xf32, #tpu.memory_space<smem>>
    %62 = vector.broadcast %61 : f32 to vector<2x128xf32>
    %63 = arith.mulf %60, %62 : vector<2x128xf32>
    %64 = arith.addf %58, %63 : vector<2x128xf32>
    %c0_33 = arith.constant 0 : index
    %c11 = arith.constant 11 : index
    %c0_34 = arith.constant 0 : index
    %65 = vector.load %arg2[%c0_33, %c11, %c0_34] : memref<2x16x128xf32, #tpu.memory_space<vmem>>, vector<2x1x128xf32>
    %66 = vector.shape_cast %65 : vector<2x1x128xf32> to vector<2x128xf32>
    %c11_35 = arith.constant 11 : index
    %67 = memref.load %arg3[%c11_35] : memref<17xf32, #tpu.memory_space<smem>>
    %68 = vector.broadcast %67 : f32 to vector<2x128xf32>
    %69 = arith.mulf %66, %68 : vector<2x128xf32>
    %70 = arith.addf %64, %69 : vector<2x128xf32>
    %c0_36 = arith.constant 0 : index
    %c12 = arith.constant 12 : index
    %c0_37 = arith.constant 0 : index
    %71 = vector.load %arg2[%c0_36, %c12, %c0_37] : memref<2x16x128xf32, #tpu.memory_space<vmem>>, vector<2x1x128xf32>
    %72 = vector.shape_cast %71 : vector<2x1x128xf32> to vector<2x128xf32>
    %c12_38 = arith.constant 12 : index
    %73 = memref.load %arg3[%c12_38] : memref<17xf32, #tpu.memory_space<smem>>
    %74 = vector.broadcast %73 : f32 to vector<2x128xf32>
    %75 = arith.mulf %72, %74 : vector<2x128xf32>
    %76 = arith.addf %70, %75 : vector<2x128xf32>
    %c0_39 = arith.constant 0 : index
    %c13 = arith.constant 13 : index
    %c0_40 = arith.constant 0 : index
    %77 = vector.load %arg2[%c0_39, %c13, %c0_40] : memref<2x16x128xf32, #tpu.memory_space<vmem>>, vector<2x1x128xf32>
    %78 = vector.shape_cast %77 : vector<2x1x128xf32> to vector<2x128xf32>
    %c13_41 = arith.constant 13 : index
    %79 = memref.load %arg3[%c13_41] : memref<17xf32, #tpu.memory_space<smem>>
    %80 = vector.broadcast %79 : f32 to vector<2x128xf32>
    %81 = arith.mulf %78, %80 : vector<2x128xf32>
    %82 = arith.addf %76, %81 : vector<2x128xf32>
    %c0_42 = arith.constant 0 : index
    %c14 = arith.constant 14 : index
    %c0_43 = arith.constant 0 : index
    %83 = vector.load %arg2[%c0_42, %c14, %c0_43] : memref<2x16x128xf32, #tpu.memory_space<vmem>>, vector<2x1x128xf32>
    %84 = vector.shape_cast %83 : vector<2x1x128xf32> to vector<2x128xf32>
    %c14_44 = arith.constant 14 : index
    %85 = memref.load %arg3[%c14_44] : memref<17xf32, #tpu.memory_space<smem>>
    %86 = vector.broadcast %85 : f32 to vector<2x128xf32>
    %87 = arith.mulf %84, %86 : vector<2x128xf32>
    %88 = arith.addf %82, %87 : vector<2x128xf32>
    %c0_45 = arith.constant 0 : index
    %c15 = arith.constant 15 : index
    %c0_46 = arith.constant 0 : index
    %89 = vector.load %arg2[%c0_45, %c15, %c0_46] : memref<2x16x128xf32, #tpu.memory_space<vmem>>, vector<2x1x128xf32>
    %90 = vector.shape_cast %89 : vector<2x1x128xf32> to vector<2x128xf32>
    %c15_47 = arith.constant 15 : index
    %91 = memref.load %arg3[%c15_47] : memref<17xf32, #tpu.memory_space<smem>>
    %92 = vector.broadcast %91 : f32 to vector<2x128xf32>
    %93 = arith.mulf %90, %92 : vector<2x128xf32>
    %94 = arith.addf %88, %93 : vector<2x128xf32>
    %c16 = arith.constant 16 : index
    %95 = memref.load %arg3[%c16] : memref<17xf32, #tpu.memory_space<smem>>
    %96 = vector.broadcast %95 : f32 to vector<2x128xf32>
    %97 = arith.addf %94, %96 : vector<2x128xf32>
    %c0_48 = arith.constant 0 : index
    %c0_49 = arith.constant 0 : index
    %98 = vector.load %arg4[%c0_48, %c0_49] : memref<2x128xf32, #tpu.memory_space<vmem>>, vector<2x128xf32>
    tpu.vector_store %arg4[%c0_48, %c0_49], %97 {strides = array<i32>} : memref<2x128xf32, #tpu.memory_space<vmem>>, vector<2x128xf32>,
    return
  }
  func.func @transform_0(%arg0: i32, %arg1: i32) -> (i32, i32, i32) {
    %c0_i32 = arith.constant 0 : i32
    %c0_i32_0 = arith.constant 0 : i32
    return %arg0, %c0_i32, %arg1 : i32, i32, i32
  }
  func.func @transform_1(%arg0: i32, %arg1: i32) -> i32 {
    %c0_i32 = arith.constant 0 : i32
    %c0_i32_0 = arith.constant 0 : i32
    return %c0_i32 : i32
  }
  func.func @transform_2(%arg0: i32, %arg1: i32) -> (i32, i32) {
    %c0_i32 = arith.constant 0 : i32
    return %arg0, %arg1 : i32, i32
  }
}

</mosaic_0001>

<llo_original>
// kernel: tpu_custom_call.1
$region0: #{tpu_custom_call.1}
  #allocation0 [shape = 'u32[]', space=smem, size = 0x4, offset = 0x4, fixed_abs, tag = 'smem constant byte address 0x4 - core index']
  #allocation1 [shape = 'u32[144,128]{1,0:T(1,128)}', space=vmem, size = 0x12000, scoped, tag = 'internal scratch']
  %s0 = inlined_call_operand.hbm [shape: f32[2,16,256], index: 0, kind: input, shape index: {}]
  %s1 = inlined_call_operand.vmem [shape: f32[17], index: 1, kind: input, shape index: {}]
  %s2 = inlined_call_operand.hbm [shape: f32[2,256], index: 2, kind: output, shape index: {}]
  %s3 = sld [smem:[#allocation0]]
  $region49: #{tpu_custom_call.1} parent=0
    _
  %s5 = ssub.s32 1, %s3
  %s6 = scalar_select 0, %s5, %s3
  $region1: #{tpu_custom_call.1} parent=0
    #allocation2 [shape = 'u8[32768]{0}', space=vmem, size = 0x8000, scoped, tag = 'input window, operand 0']
    #allocation3 [shape = 's32[2]{0}', space=sflag, size = 0x8, scoped, tag = 'scoped memory for tpu_custom_call.1']
    #allocation4 [shape = 's32[2]{0}', space=sflag, size = 0x8, scoped, tag = 'scoped memory for tpu_custom_call.1']
    #allocation5 [shape = 's32[2]{0}', space=sflag, size = 0x8, scoped, tag = 'scoped memory for tpu_custom_call.1']
    #allocation6 [shape = 'u8[512]{0}', space=smem, size = 0x200, scoped, tag = 'input window, operand 1, single buffered']
    #allocation7 [shape = 'u8[2048]{0}', space=vmem, size = 0x800, scoped, tag = 'output window, operand 0']
    %7 = vsyncpa [#allocation3], 0
    %s8 = scalar_lea.sflag [#allocation3], 1
    %9 = vsyncpa %s8, 0
    %10 = vsyncpa [#allocation5], 0
    %11 = vsyncpa [#allocation4], 0
    %s12 = scalar_lea.sflag [#allocation4], 1
    %13 = vsyncpa %s12, 0
    loop: start=0, step=1, limit=4
    $region2: #{tpu_custom_call.1} parent=1 // loop_pre_header
      _
    $region3: #{tpu_custom_call.1} parent=1 // loop_header
      %s15 = sphi 0, %s19
      %p16 = scmp.ge.s32.totalorder %s15, 4
      %s22 = sphi 0, %s34
      %s23 = sphi 0, %s30
      %s24 = sphi 0, %s22
      %s25 = sphi 0, %s23
      %s26 = sphi 0, %s24
      %s27 = sphi 0, %s25
      %s39 = sphi 0, %s41
      %s42 = sphi 0, %s39
      %s43 = sphi 0, %s42
      %s59 = sphi 0, %s43
      %s63 = sphi 0, %s63
      %s65 = sphi 0, %s63
      %s66 = sphi 0, %s65
      %s80 = sphi 0, %s66
      %s88 = sphi 0, %s90
      %s91 = sphi 0, %s88
      %s92 = sphi 0, %s91
      %s108 = sphi 0, %s92
    $region4: #{tpu_custom_call.1} parent=1 // loop_header_branch
      %18 = sbr.rel (%p16) target = $region8
    $region5: #{tpu_custom_call.1} parent=1 // loop_body
      %s20 = ssub.s32 %s15, 1
      %s21 = ssub.s32 %s15, 2
      %s28 = sadd.s32 1, %s23
      %p29 = scmp.ge.s32.totalorder %s28, 2
      %s30 = scalar_select %p29, 0, %s28
      %s31 = sadd.s32 1, %s22
      %s32 = scalar_select %p29, %s31, %s22
      %p33 = scmp.ge.s32.totalorder %s32, 1
      %s34 = scalar_select %p33, 0, %s32
      %s35 = ssub.s32 %s22, %s34
      %s36 = ssub.s32 %s23, %s30
      %s37 = sor.u32 %s35, %s36
      %p38 = scmp.eq.s32.totalorder %s37, 0
      %s40 = sadd.s32 %s39, 1
      %s41 = scalar_select %p38, %s39, %s40
      %p44 = pneg %p38
      %p45 = scmp.eq.s32.totalorder %s15, 1
      %p46 = por %p44, %p45
      %p47 = scmp.ne.s32.totalorder %s39, %s42
      %p48 = scmp.eq.s32.totalorder %s15, 0
      %p49 = por %p47, %p48
      %p50 = scmp.ne.s32.totalorder %s39, %s42
      %p51 = scmp.eq.s32.totalorder %s20, 1
      %p52 = por %p50, %p51
      %p53 = scmp.ne.s32.totalorder %s42, %s43
      %p54 = scmp.eq.s32.totalorder %s20, 0
      %p55 = por %p53, %p54
      %p56 = scmp.ne.s32.totalorder %s42, %s43
      %p57 = scmp.eq.s32.totalorder %s21, 1
      %p58 = por %p56, %p57
      %p60 = scmp.ne.s32.totalorder %s43, %s59
      %p61 = scmp.eq.s32.totalorder %s21, 0
      %p62 = por %p60, %p61
      %s64 = sadd.s32 %s63, 1
      %p67 = scmp.eq.s32.totalorder %s15, 1
      %p68 = scmp.ne.s32.totalorder %s63, %s65
      %p69 = scmp.eq.s32.totalorder %s15, 0
      %p70 = por %p68, %p69
      %p71 = scmp.ne.s32.totalorder %s63, %s65
      %p72 = scmp.eq.s32.totalorder %s20, 1
      %p73 = por %p71, %p72
      %p74 = scmp.ne.s32.totalorder %s65, %s66
      %p75 = scmp.eq.s32.totalorder %s20, 0
      %p76 = por %p74, %p75
      %p77 = scmp.ne.s32.totalorder %s65, %s66
      %p78 = scmp.eq.s32.totalorder %s21, 1
      %p79 = por %p77, %p78
      %p81 = scmp.ne.s32.totalorder %s66, %s80
      %p82 = scmp.eq.s32.totalorder %s21, 0
      %p83 = por %p81, %p82
      %s84 = ssub.s32 %s22, %s34
      %s85 = ssub.s32 %s23, %s30
      %s86 = sor.u32 %s84, %s85
      %p87 = scmp.eq.s32.totalorder %s86, 0
      %s89 = sadd.s32 %s88, 1
      %s90 = scalar_select %p87, %s88, %s89
      %p93 = pneg %p87
      %p94 = scmp.eq.s32.totalorder %s15, 1
      %p95 = por %p93, %p94
      %p96 = scmp.ne.s32.totalorder %s88, %s91
      %p97 = scmp.eq.s32.totalorder %s15, 0
      %p98 = por %p96, %p97
      %p99 = scmp.ne.s32.totalorder %s88, %s91
      %p100 = scmp.eq.s32.totalorder %s20, 1
      %p101 = por %p99, %p100
      %p102 = scmp.ne.s32.totalorder %s91, %s92
      %p103 = scmp.eq.s32.totalorder %s20, 0
      %p104 = por %p102, %p103
      %p105 = scmp.ne.s32.totalorder %s91, %s92
      %p106 = scmp.eq.s32.totalorder %s21, 1
      %p107 = por %p105, %p106
      %p109 = scmp.ne.s32.totalorder %s92, %s108
      %p110 = scmp.eq.s32.totalorder %s21, 0
      %p111 = por %p109, %p110
      %p112 = scmp.le.s32.totalorder 1, %s15
      %p113 = scmp.lt.s32.totalorder %s15, 3
      %p114 = pnand %p112, %p113
      %p115 = pneg %p114
      // Predicated region
      $region9: #{tpu_custom_call.1} parent=5 // pred_check
        _
      $region10: #{tpu_custom_call.1} parent=5 // pred_check_branch
        %117 = sbr.rel (%p114) target = $region12
      $region11: #{tpu_custom_call.1} parent=5 // pred_region
        %s118 = ssub.s32 %s15, 1
        // Predicated region
        $region13: #{tpu_custom_call.1} parent=11 // pred_check
          %p119 = pneg %p76
        $region14: #{tpu_custom_call.1} parent=11 // pred_check_branch
          %121 = sbr.rel (%p119) target = $region16
        $region15: #{tpu_custom_call.1} parent=11 // pred_region
          %s123 = ssub.s32 16, 16
          %124 = vsyncadd [#allocation5], %s123
          %s126 = sshll.u32 %s1, 4
          %s127 = int_to_ptr.vmem [resolvable:$true] %s126
          %129 = dma.vmem_to_smem %s127, 16, [#allocation6], [#allocation5]
        $region16: #{tpu_custom_call.1} parent=11 // pred_fallthru
          _
      $region12: #{tpu_custom_call.1} parent=5 // pred_fallthru
        _
      %p130 = scmp.lt.s32.totalorder %s15, 2
      // Predicated region
      $region17: #{tpu_custom_call.1} parent=5 // pred_check
        %p131 = pneg %p130
      $region18: #{tpu_custom_call.1} parent=5 // pred_check_branch
        %133 = sbr.rel (%p131) target = $region20
      $region19: #{tpu_custom_call.1} parent=5 // pred_region
        // Predicated region
        $region21: #{tpu_custom_call.1} parent=19 // pred_check
          %p134 = pneg %p49
        $region22: #{tpu_custom_call.1} parent=19 // pred_check_branch
          %136 = sbr.rel (%p134) target = $region24
        $region23: #{tpu_custom_call.1} parent=19 // pred_region
          %s137 = sand.u32 %s39, 1
          %s138 = scalar_lea.sflag [#allocation3], %s137
          %s139 = sand.u32 %s39, 1
          %s140 = smul.addr %s139, 32
          %s141 = scalar_lea.vmem [#allocation2], %s140
          %s142 = smul.u32 2, %s22
          %s144 = ssub.s32 512, 512
          %145 = vsyncadd %s138, %s144
          %s146 = smul.addr %s142, 4
          %s147 = sadd.s32 %s23, %s146
          %s148 = smul.addr %s147, 128
          %s149 = scalar_lea.hbm %s0, %s148
          %s150 = sshll.u32 %s141, 4
          %s151 = int_to_ptr.vmem [resolvable:$true] %s150
          %156 = dma.hbm_to_vmem [thread:$0]  %s149, 512, %s151, %s138, 256, 128, 8
        $region24: #{tpu_custom_call.1} parent=19 // pred_fallthru
          _
      $region20: #{tpu_custom_call.1} parent=5 // pred_fallthru
        _
      %p157 = scmp.le.s32.totalorder 1, %s15
      %p158 = scmp.lt.s32.totalorder %s15, 3
      %p159 = pnand %p157, %p158
      %p160 = pneg %p159
      // Predicated region
      $region25: #{tpu_custom_call.1} parent=5 // pred_check
        _
      $region26: #{tpu_custom_call.1} parent=5 // pred_check_branch
        %162 = sbr.rel (%p159) target = $region28
      $region27: #{tpu_custom_call.1} parent=5 // pred_region
        %s163 = ssub.s32 %s15, 1
        %s164 = sand.u32 %s42, 1
        %s165 = scalar_lea.sflag [#allocation3], %s164
        %s166 = sand.u32 %s42, 1
        %s167 = smul.addr %s166, 32
        %s168 = scalar_lea.vmem [#allocation2], %s167
        // Predicated region
        $region29: #{tpu_custom_call.1} parent=27 // pred_check
          %p169 = pneg %p55
        $region30: #{tpu_custom_call.1} parent=27 // pred_check_branch
          %171 = sbr.rel (%p169) target = $region32
        $region31: #{tpu_custom_call.1} parent=27 // pred_region
          %172 = dma.done %s165, 512
        $region32: #{tpu_custom_call.1} parent=27 // pred_fallthru
          _
        // Predicated region
        $region33: #{tpu_custom_call.1} parent=27 // pred_check
          %p173 = pneg %p76
        $region34: #{tpu_custom_call.1} parent=27 // pred_check_branch
          %175 = sbr.rel (%p173) target = $region36
        $region35: #{tpu_custom_call.1} parent=27 // pred_region
          %176 = dma.done [#allocation5], 16
        $region36: #{tpu_custom_call.1} parent=27 // pred_fallthru
          _
        %177 = sfence
        %s178 = sand.u32 %s42, 1
        %s179 = scalar_lea.sflag [#allocation3], %s178
        %s180 = sand.u32 %s42, 1
        %s181 = smul.addr %s180, 32
        %s182 = scalar_lea.vmem [#allocation2], %s181
        %p183 = pneg %p55
        %p184 = pneg %p52
        %p185 = pneg %p76
        %p186 = pneg %p73
        %p187 = pneg %p104
        %p188 = pneg %p101
        %s189 = sand.u32 %s91, 1
        %s190 = scalar_lea.sflag [#allocation4], %s189
        %s191 = sand.u32 %s91, 1
        %s192 = smul.addr %s191, 2
        %s193 = scalar_lea.vmem [#allocation7], %s192
        %s194 = smul.u32 2, %s24
        %v195 = vld [vmem:[%s168] sm:$0x1]
        %v196 = vld [vmem:[%s168 + $0x10] sm:$0x1]
        %s197 = sld [smem:[#allocation6]]
        %v198 = vstv %s197
        %v199 = vmul.f32 %v195, %v198
        %v200 = vmul.f32 %v196, %v198
        %v201 = vld [vmem:[%s168 + $0x1] sm:$0x1]
        %v202 = vld [vmem:[%s168 + $0x11] sm:$0x1]
        %s203 = sld [smem:[#allocation6 + $0x1]]
        %v204 = vstv %s203
        %v205 = vmul.f32 %v201, %v204
        %v206 = vmul.f32 %v202, %v204
        %v207 = vadd.f32 %v199, %v205
        %v208 = vadd.f32 %v200, %v206
        %v209 = vld [vmem:[%s168 + $0x2] sm:$0x1]
        %v210 = vld [vmem:[%s168 + $0x12] sm:$0x1]
        %s211 = sld [smem:[#allocation6 + $0x2]]
        %v212 = vstv %s211
        %v213 = vmul.f32 %v209, %v212
        %v214 = vmul.f32 %v210, %v212
        %v215 = vadd.f32 %v207, %v213
        %v216 = vadd.f32 %v208, %v214
        %v217 = vld [vmem:[%s168 + $0x3] sm:$0x1]
        %v218 = vld [vmem:[%s168 + $0x13] sm:$0x1]
        %s219 = sld [smem:[#allocation6 + $0x3]]
        %v220 = vstv %s219
        %v221 = vmul.f32 %v217, %v220
        %v222 = vmul.f32 %v218, %v220
        %v223 = vadd.f32 %v215, %v221
        %v224 = vadd.f32 %v216, %v222
        %v225 = vld [vmem:[%s168 + $0x4] sm:$0x1]
        %v226 = vld [vmem:[%s168 + $0x14] sm:$0x1]
        %s227 = sld [smem:[#allocation6 + $0x4]]
        %v228 = vstv %s227
        %v229 = vmul.f32 %v225, %v228
        %v230 = vmul.f32 %v226, %v228
        %v231 = vadd.f32 %v223, %v229
        %v232 = vadd.f32 %v224, %v230
        %v233 = vld [vmem:[%s168 + $0x5] sm:$0x1]
        %v234 = vld [vmem:[%s168 + $0x15] sm:$0x1]
        %s235 = sld [smem:[#allocation6 + $0x5]]
        %v236 = vstv %s235
        %v237 = vmul.f32 %v233, %v236
        %v238 = vmul.f32 %v234, %v236
        %v239 = vadd.f32 %v231, %v237
        %v240 = vadd.f32 %v232, %v238
        %v241 = vld [vmem:[%s168 + $0x6] sm:$0x1]
        %v242 = vld [vmem:[%s168 + $0x16] sm:$0x1]
        %s243 = sld [smem:[#allocation6 + $0x6]]
        %v244 = vstv %s243
        %v245 = vmul.f32 %v241, %v244
        %v246 = vmul.f32 %v242, %v244
        %v247 = vadd.f32 %v239, %v245
        %v248 = vadd.f32 %v240, %v246
        %v249 = vld [vmem:[%s168 + $0x7] sm:$0x1]
        %v250 = vld [vmem:[%s168 + $0x17] sm:$0x1]
        %s251 = sld [smem:[#allocation6 + $0x7]]
        %v252 = vstv %s251
        %v253 = vmul.f32 %v249, %v252
        %v254 = vmul.f32 %v250, %v252
        %v255 = vadd.f32 %v247, %v253
        %v256 = vadd.f32 %v248, %v254
        %v257 = vld [vmem:[%s168 + $0x8] sm:$0x1]
        %v258 = vld [vmem:[%s168 + $0x18] sm:$0x1]
        %s259 = sld [smem:[#allocation6 + $0x8]]
        %v260 = vstv %s259
        %v261 = vmul.f32 %v257, %v260
        %v262 = vmul.f32 %v258, %v260
        %v263 = vadd.f32 %v255, %v261
        %v264 = vadd.f32 %v256, %v262
        %v265 = vld [vmem:[%s168 + $0x9] sm:$0x1]
        %v266 = vld [vmem:[%s168 + $0x19] sm:$0x1]
        %s267 = sld [smem:[#allocation6 + $0x9]]
        %v268 = vstv %s267
        %v269 = vmul.f32 %v265, %v268
        %v270 = vmul.f32 %v266, %v268
        %v271 = vadd.f32 %v263, %v269
        %v272 = vadd.f32 %v264, %v270
        %v273 = vld [vmem:[%s168 + $0xa] sm:$0x1]
        %v274 = vld [vmem:[%s168 + $0x1a] sm:$0x1]
        %s275 = sld [smem:[#allocation6 + $0xa]]
        %v276 = vstv %s275
        %v277 = vmul.f32 %v273, %v276
        %v278 = vmul.f32 %v274, %v276
        %v279 = vadd.f32 %v271, %v277
        %v280 = vadd.f32 %v272, %v278
        %v281 = vld [vmem:[%s168 + $0xb] sm:$0x1]
        %v282 = vld [vmem:[%s168 + $0x1b] sm:$0x1]
        %s283 = sld [smem:[#allocation6 + $0xb]]
        %v284 = vstv %s283
        %v285 = vmul.f32 %v281, %v284
        %v286 = vmul.f32 %v282, %v284
        %v287 = vadd.f32 %v279, %v285
        %v288 = vadd.f32 %v280, %v286
        %v289 = vld [vmem:[%s168 + $0xc] sm:$0x1]
        %v290 = vld [vmem:[%s168 + $0x1c] sm:$0x1]
        %s291 = sld [smem:[#allocation6 + $0xc]]
        %v292 = vstv %s291
        %v293 = vmul.f32 %v289, %v292
        %v294 = vmul.f32 %v290, %v292
        %v295 = vadd.f32 %v287, %v293
        %v296 = vadd.f32 %v288, %v294
        %v297 = vld [vmem:[%s168 + $0xd] sm:$0x1]
        %v298 = vld [vmem:[%s168 + $0x1d] sm:$0x1]
        %s299 = sld [smem:[#allocation6 + $0xd]]
        %v300 = vstv %s299
        %v301 = vmul.f32 %v297, %v300
        %v302 = vmul.f32 %v298, %v300
        %v303 = vadd.f32 %v295, %v301
        %v304 = vadd.f32 %v296, %v302
        %v305 = vld [vmem:[%s168 + $0xe] sm:$0x1]
        %v306 = vld [vmem:[%s168 + $0x1e] sm:$0x1]
        %s307 = sld [smem:[#allocation6 + $0xe]]
        %v308 = vstv %s307
        %v309 = vmul.f32 %v305, %v308
        %v310 = vmul.f32 %v306, %v308
        %v311 = vadd.f32 %v303, %v309
        %v312 = vadd.f32 %v304, %v310
        %v313 = vld [vmem:[%s168 + $0xf] sm:$0x1]
        %v314 = vld [vmem:[%s168 + $0x1f] sm:$0x1]
        %s315 = sld [smem:[#allocation6 + $0xf]]
        %v316 = vstv %s315
        %v317 = vmul.f32 %v313, %v316
        %v318 = vmul.f32 %v314, %v316
        %v319 = vadd.f32 %v311, %v317
        %v320 = vadd.f32 %v312, %v318
        %s321 = sld [smem:[#allocation6 + $0x10]]
        %v322 = vstv %s321
        %v323 = vadd.f32 %v319, %v322
        %v324 = vadd.f32 %v320, %v322
        %v327 = vrot.slane %v324, 7
        %vm328 = vcmask 1041409
        %v329 = vsel %vm328, %v327, %v323
        %331 = vst [vmem:[%s193] sm:$0x3] %v329
        %s332 = sand.u32 %s91, 1
        %s333 = scalar_lea.sflag [#allocation4], %s332
        %s334 = sand.u32 %s91, 1
        %s335 = smul.addr %s334, 2
        %s336 = scalar_lea.vmem [#allocation7], %s335
        // Predicated region
        $region37: #{tpu_custom_call.1} parent=27 // pred_check
          %p337 = pneg %p101
        $region38: #{tpu_custom_call.1} parent=27 // pred_check_branch
          %339 = sbr.rel (%p337) target = $region40
        $region39: #{tpu_custom_call.1} parent=27 // pred_region
          %s341 = ssub.s32 32, 32
          %342 = vsyncadd %s333, %s341
          %s343 = smul.addr %s24, 2
          %s344 = sadd.s32 %s25, %s343
          %s345 = smul.addr %s344, 32
          %s346 = scalar_lea.hbm %s2, %s345
          %s348 = sshll.u32 %s336, 4
          %s349 = int_to_ptr.vmem [resolvable:$true] %s348
          %351 = dma.vmem_to_hbm [thread:$0]  %s349, 32, %s346, %s333
        $region40: #{tpu_custom_call.1} parent=27 // pred_fallthru
          _
      $region28: #{tpu_custom_call.1} parent=5 // pred_fallthru
        _
      %p352 = scmp.le.s32.totalorder 2, %s15
      // Predicated region
      $region41: #{tpu_custom_call.1} parent=5 // pred_check
        %p353 = pneg %p352
      $region42: #{tpu_custom_call.1} parent=5 // pred_check_branch
        %355 = sbr.rel (%p353) target = $region44
      $region43: #{tpu_custom_call.1} parent=5 // pred_region
        %s356 = ssub.s32 %s15, 2
        // Predicated region
        $region45: #{tpu_custom_call.1} parent=43 // pred_check
          %p357 = pneg %p107
        $region46: #{tpu_custom_call.1} parent=43 // pred_check_branch
          %359 = sbr.rel (%p357) target = $region48
        $region47: #{tpu_custom_call.1} parent=43 // pred_region
          %s360 = sand.u32 %s92, 1
          %s361 = scalar_lea.sflag [#allocation4], %s360
          %s362 = sand.u32 %s92, 1
          %s363 = smul.addr %s362, 2
          %s364 = scalar_lea.vmem [#allocation7], %s363
          %365 = dma.done %s361, 32
        $region48: #{tpu_custom_call.1} parent=43 // pred_fallthru
          _
      $region44: #{tpu_custom_call.1} parent=5 // pred_fallthru
        _
    $region6: #{tpu_custom_call.1} parent=1 // loop_footer
      %s19 = sadd.s32 1, %s15
    $region7: #{tpu_custom_call.1} parent=1 // loop_footer_branch
      %14 = sbr.rel target = $region3
    $region8: #{tpu_custom_call.1} parent=1 // loop_exit
      _
    %366 = vsyncpa [#allocation3], 1
    %s367 = scalar_lea.sflag [#allocation3], 1
    %368 = vsyncpa %s367, 1
    %369 = vsyncpa [#allocation4], 1
    %s370 = scalar_lea.sflag [#allocation4], 1
    %371 = vsyncpa %s370, 1
    %372 = vsyncpa [#allocation5], 1
    %s373 = scalar_lea.sflag [#allocation5], 1
    %374 = vsyncpa %s373, 1

</llo_original>
